<compile_context>
chip_gen: v7x
topology: tpu7x:2x2x1
jax: 0.10.0
libtpu: 0.0.40
codegen_flags: <defaults>
</compile_context>

<pallas_src>
import jax
import jax.numpy as jnp
from jax.experimental import pallas as pl
from jax.experimental.pallas import tpu as pltpu


def _make_kernel(alpha, gamma, batch, tile_b, tiles_per_core):
    alpha = float(alpha)
    gamma = float(gamma)

    def kernel(logits_ref, targets_ref, out_ref, acc_ref):
        p = pl.program_id(0)                      # partial-sum / core index ("parallel")
        t = pl.program_id(1)                      # batch-tile index per core ("arbitrary")

        @pl.when(t == 0)
        def _():
            acc_ref[...] = jnp.zeros_like(acc_ref)

        x = logits_ref[...].astype(jnp.float32)   # [C, TB] classes x batch (lane-dense batch)
        tgt = targets_ref[...]                    # [1, TB] int32

        # Numerically stable log-softmax pieces over the class (sublane) axis.
        m = jnp.max(x, axis=0, keepdims=True)                       # [1, TB]
        s = x - m
        exp_s = jnp.exp(s)                                          # reused for pt
        sum_exp = jnp.sum(exp_s, axis=0, keepdims=True)             # [1, TB]

        cls_idx = jax.lax.broadcasted_iota(jnp.int32, x.shape, 0)   # [C, TB]
        onehot = cls_idx == tgt
        picked_s = jnp.sum(jnp.where(onehot, s, 0.0), axis=0, keepdims=True)
        picked_e = jnp.sum(jnp.where(onehot, exp_s, 0.0), axis=0, keepdims=True)

        # nll = -log_softmax[target]; clamp keeps pt-derived weight sane.
        nll = jnp.maximum(jnp.log(sum_exp) - picked_s, 0.0)         # [1, TB]
        # pt from the already-computed exponentials: one cheap EUP vrcp instead
        # of another exp per batch element.
        pt = picked_e * pl.reciprocal(sum_exp, approx=True)
        w = jnp.maximum(1.0 - pt, 0.0)
        if gamma == 2.0:
            mod = w * w                            # VPU, no transcendental
        elif gamma == 1.0:
            mod = w
        elif gamma == 0.0:
            mod = jnp.ones_like(w)
        else:
            # w >= 0 by construction; log(0) = -inf -> exp(gamma * -inf) = 0,
            # so this is NaN-free for gamma > 0.
            mod = jnp.exp(jnp.float32(gamma) * jnp.log(w))
        focal = jnp.float32(alpha) * mod * nll                      # [1, TB]

        # Global tile id / batch offset of this block (tiles beyond the real
        # batch are clamped to the last block by the index_map and fully
        # masked out here).
        tile = p * tiles_per_core + t
        start = tile * tile_b
        is_full = (start + tile_b) <= batch

        @pl.when(is_full)
        def _():
            acc_ref[...] += focal                  # steady-state: no mask work

        @pl.when(jnp.logical_not(is_full))
        def _():
            col = jax.lax.broadcasted_iota(jnp.int32, focal.shape, 1)
            valid = (start + col) < batch
            acc_ref[...] += jnp.where(valid, focal, 0.0)

        @pl.when(t == pl.num_programs(1) - 1)
        def _():
            # Single cross-lane reduction per core, broadcast into this core's
            # (8,128) output slab (keeps the output block spec (8,128)-aligned).
            total = jnp.sum(acc_ref[...])
            out_ref[...] = jnp.full((8, 128), total, dtype=jnp.float32)

    return kernel


def _choose_tile_b(batch, num_classes, itemsize):
    # ~2 MiB logits block: big enough to amortize the ~0.35 us per-step
    # pipeline overhead (~85%+ of HBM roofline), small enough that two
    # double-buffered inputs + the (1,TB) accumulator stay far below every
    # generation's scoped VMEM, including v7x (64 MiB physical).
    target_bytes = 2 * 1024 * 1024
    tb = target_bytes // max(itemsize * num_classes, 1)
    tb = max(128, min(128 * 1024, (tb // 128) * 128))
    b_pad128 = ((batch + 127) // 128) * 128
    return min(tb, b_pad128)


def focal_loss(logits, targets, *, alpha=0.25, gamma=2.0, tile_b=None,
               num_cores=2, class_major=False):
    """Mean focal loss.

    logits:  [B, C] (default) or [C, B] if class_major=True.  Any float dtype;
             bf16 inputs are DMA'd as bf16 and upcast inside the kernel.
    targets: [B] integer class labels in [0, C).
    """
    if class_major:
        C, B = logits.shape
        logits_cm = logits                       # producer already emitted [C, B]: zero-copy path
    else:
        B, C = logits.shape
        # TODO(synk): the standalone transpose is one extra HBM read+write of
        # the logits.  The real fix is producer-side (emit classes-major); the
        # in-kernel alternative ([B,C] blocks with C on lanes) is ~128/C-fold
        # EUP/VPU waste and measures worse than the extra HBM pass.
        logits_cm = jnp.transpose(logits)        # [C, B]

    itemsize = jnp.dtype(logits.dtype).itemsize
    TB = tile_b if tile_b is not None else _choose_tile_b(B, C, itemsize)
    assert TB % 128 == 0
    num_tiles = -(-B // TB)                      # cdiv; NO padding of B
    num_cores = max(1, int(num_cores))
    tiles_per_core = -(-num_tiles // num_cores)

    targets_2d = targets.astype(jnp.int32).reshape(1, B)   # free reshape, no pad

    def tile_index(p, t):
        # Clamp padding tiles (p*tiles_per_core + t >= num_tiles) onto the last
        # real block; the kernel masks their contribution to exactly zero.
        return jnp.minimum(p * tiles_per_core + t, num_tiles - 1)

    # VMEM budget: double-buffered logits + targets blocks, the (1,TB) f32
    # accumulator, plus slack; capped at 48 MiB (v7x has only 64 MiB physical).
    blk_bytes = itemsize * C * TB + 4 * TB
    needed = 2 * blk_bytes + 4 * TB + (1 << 20)
    vmem_limit = int(min(48 << 20, max(16 << 20, 4 * needed)))

    out = pl.pallas_call(
        _make_kernel(alpha, gamma, B, TB, tiles_per_core),
        out_shape=jax.ShapeDtypeStruct((num_cores * 8, 128), jnp.float32),
        grid_spec=pltpu.PrefetchScalarGridSpec(
            num_scalar_prefetch=0,
            grid=(num_cores, tiles_per_core),
            in_specs=[
                pl.BlockSpec((C, TB), lambda p, t: (0, tile_index(p, t))),
                pl.BlockSpec((1, TB), lambda p, t: (0, tile_index(p, t))),
            ],
            out_specs=pl.BlockSpec((8, 128), lambda p, t: (p, 0)),
            scratch_shapes=[pltpu.VMEM((1, TB), jnp.float32)],
        ),
        compiler_params=pltpu.CompilerParams(
            dimension_semantics=("parallel", "arbitrary"),
            vmem_limit_bytes=vmem_limit,
        ),
    )(logits_cm, targets_2d)

    partials = out[::8, 0]                       # one partial sum per core slab
    return jnp.sum(partials) / jnp.float32(B)    # mean over the true batch


def focal_loss_ref(logits, targets, alpha=0.25, gamma=2.0):
    # Pure-JAX reference mirroring the PyTorch module.
    log_probs = jax.nn.log_softmax(logits.astype(jnp.float32), axis=1)
    nll = -jnp.take_along_axis(log_probs, targets[:, None].astype(jnp.int32),
                               axis=1)[:, 0]
    pt = jnp.exp(-nll)
    return jnp.mean(alpha * (1.0 - pt) ** gamma * nll)


if __name__ == "__main__":
    key = jax.random.PRNGKey(0)
    k1, k2, k3, k4 = jax.random.split(key, 4)

    # Shapes implied by the module: logits [batch_size, num_classes], targets [batch_size].
    B, C = 8, 4
    logits = jax.random.normal(k1, (B, C), dtype=jnp.float32)
    targets = jax.random.randint(k2, (B,), 0, C, dtype=jnp.int32)
    loss = focal_loss(logits, targets)
    jax.block_until_ready(loss)
    ref = focal_loss_ref(logits, targets)
    # Tolerance accounts for pl.reciprocal(approx=True) in the pt computation.
    assert jnp.allclose(loss, ref, atol=5e-4, rtol=5e-3), (loss, ref)

    # Multi-tile + ragged-tail check: exercises both core partitions, the
    # clamped padding tile, the unmasked fast path and the masked last tile.
    B2, C2 = 777, 5
    logits2 = jax.random.normal(k3, (B2, C2), dtype=jnp.float32)
    targets2 = jax.random.randint(k4, (B2,), 0, C2, dtype=jnp.int32)
    loss2 = focal_loss(logits2, targets2, tile_b=128)
    jax.block_until_ready(loss2)
    ref2 = focal_loss_ref(logits2, targets2)
    assert jnp.allclose(loss2, ref2, atol=5e-4, rtol=5e-3), (loss2, ref2)

    # Zero-copy class-major ingestion path (producer emits [C, B] directly).
    loss2b = focal_loss(jnp.transpose(logits2), targets2, tile_b=128,
                        class_major=True)
    jax.block_until_ready(loss2b)
    assert jnp.allclose(loss2b, ref2, atol=5e-4, rtol=5e-3), (loss2b, ref2)

    # Non-integer gamma (exp/log path) — locks in the w >= 0 clamp behaviour.
    loss3 = focal_loss(logits2, targets2, gamma=1.5, tile_b=256)
    jax.block_until_ready(loss3)
    ref3 = focal_loss_ref(logits2, targets2, gamma=1.5)
    assert jnp.allclose(loss3, ref3, atol=5e-4, rtol=5e-3), (loss3, ref3)

    print("KERNEL_OK")
</pallas_src>

<mosaic_0001>
module attributes {stable_mosaic.version = 11 : i64} {
  func.func @kernel(%arg0: i32, %arg1: i32, %arg2: memref<4x128xf32, #tpu.memory_space<vmem>>, %arg3: memref<1x128xi32, #tpu.memory_space<vmem>>, %arg4: memref<8x128xf32, #tpu.memory_space<vmem>>, %arg5: memref<1x128xf32, #tpu.memory_space<vmem>>) attributes {dimension_semantics = [#tpu.dimension_semantics<parallel>, #tpu.dimension_semantics<arbitrary>], iteration_bounds = array<i64: 2, 1>, scalar_prefetch = 0 : i64, scratch_operands = 1 : i64, tpu.core_type = #tpu.core_type<tc>, window_params = [{transform_indices = @transform_0, window_bounds = array<i64: 4, 128>}, {transform_indices = @transform_1, window_bounds = array<i64: 1, 128>}, {transform_indices = @transform_2, window_bounds = array<i64: 8, 128>}]} {
    %c0_i32 = arith.constant 0 : i32
    %0 = arith.cmpi eq, %arg1, %c0_i32 : i32
    %1 = arith.extui %0 : i1 to i32
    %c0_i32_0 = arith.constant 0 : i32
    %2 = arith.cmpi ne, %1, %c0_i32_0 : i32
    scf.if %2 {
      %cst_18 = arith.constant 0.000000e+00 : f32
      %50 = vector.broadcast %cst_18 : f32 to vector<1x128xf32>
      %c0_19 = arith.constant 0 : index
      %c0_20 = arith.constant 0 : index
      %51 = vector.load %arg5[%c0_19, %c0_20] : memref<1x128xf32, #tpu.memory_space<vmem>>, vector<1x128xf32>
      tpu.vector_store %arg5[%c0_19, %c0_20], %50 {strides = array<i32>} : memref<1x128xf32, #tpu.memory_space<vmem>>, vector<1x128xf32>,
    } else {
    }
    %c0 = arith.constant 0 : index
    %c0_1 = arith.constant 0 : index
    %3 = vector.load %arg2[%c0, %c0_1] : memref<4x128xf32, #tpu.memory_space<vmem>>, vector<4x128xf32>
    %c0_2 = arith.constant 0 : index
    %c0_3 = arith.constant 0 : index
    %4 = vector.load %arg3[%c0_2, %c0_3] : memref<1x128xi32, #tpu.memory_space<vmem>>, vector<1x128xi32>
    %cst = arith.constant dense<0xFF800000> : vector<128xf32>
    %5 = vector.multi_reduction <maximumf>, %3, %cst [0] : vector<4x128xf32> to vector<128xf32>
    %6 = vector.shape_cast %5 : vector<128xf32> to vector<1x128xf32>
    %7 = vector.broadcast %6 : vector<1x128xf32> to vector<4x128xf32>
    %8 = arith.subf %3, %7 : vector<4x128xf32>
    %9 = math.exp %8 : vector<4x128xf32>
    %cst_4 = arith.constant dense<0.000000e+00> : vector<128xf32>
    %10 = vector.multi_reduction <add>, %9, %cst_4 [0] : vector<4x128xf32> to vector<128xf32>
    %11 = vector.shape_cast %10 : vector<128xf32> to vector<1x128xf32>
    %12 = tpu.iota {dimensions = array<i32: 0>} : vector<4x128xi32>
    %13 = vector.broadcast %4 : vector<1x128xi32> to vector<4x128xi32>
    %14 = arith.cmpi eq, %12, %13 : vector<4x128xi32>
    %cst_5 = arith.constant 0.000000e+00 : f32
    %15 = vector.broadcast %cst_5 : f32 to vector<4x128xf32>
    %16 = arith.select %14, %8, %15 : vector<4x128xi1>, vector<4x128xf32>
    %cst_6 = arith.constant dense<0.000000e+00> : vector<128xf32>
    %17 = vector.multi_reduction <add>, %16, %cst_6 [0] : vector<4x128xf32> to vector<128xf32>
    %18 = vector.shape_cast %17 : vector<128xf32> to vector<1x128xf32>
    %cst_7 = arith.constant 0.000000e+00 : f32
    %19 = vector.broadcast %cst_7 : f32 to vector<4x128xf32>
    %20 = arith.select %14, %9, %19 : vector<4x128xi1>, vector<4x128xf32>
    %cst_8 = arith.constant dense<0.000000e+00> : vector<128xf32>
    %21 = vector.multi_reduction <add>, %20, %cst_8 [0] : vector<4x128xf32> to vector<128xf32>
    %22 = vector.shape_cast %21 : vector<128xf32> to vector<1x128xf32>
    %23 = math.log %11 : vector<1x128xf32>
    %24 = arith.subf %23, %18 : vector<1x128xf32>
    %cst_9 = arith.constant 0.000000e+00 : f32
    %25 = vector.broadcast %cst_9 : f32 to vector<1x128xf32>
    %26 = arith.maximumf %24, %25 : vector<1x128xf32>
    %27 = tpu.reciprocal %11 {approx = true} : vector<1x128xf32> -> vector<1x128xf32>
    %28 = arith.mulf %22, %27 : vector<1x128xf32>
    %cst_10 = arith.constant 1.000000e+00 : f32
    %29 = vector.broadcast %cst_10 : f32 to vector<1x128xf32>
    %30 = arith.subf %29, %28 : vector<1x128xf32>
    %cst_11 = arith.constant 0.000000e+00 : f32
    %31 = vector.broadcast %cst_11 : f32 to vector<1x128xf32>
    %32 = arith.maximumf %30, %31 : vector<1x128xf32>
    %33 = arith.mulf %32, %32 : vector<1x128xf32>
    %cst_12 = arith.constant 2.500000e-01 : f32
    %34 = vector.broadcast %cst_12 : f32 to vector<1x128xf32>
    %35 = arith.mulf %34, %33 : vector<1x128xf32>
    %36 = arith.mulf %35, %26 : vector<1x128xf32>
    %c1_i32 = arith.constant 1 : i32
    %37 = arith.muli %arg0, %c1_i32 : i32
    %38 = arith.addi %37, %arg1 : i32
    %c128_i32 = arith.constant 128 : i32
    %39 = arith.muli %38, %c128_i32 : i32
    %c128_i32_13 = arith.constant 128 : i32
    %40 = arith.addi %39, %c128_i32_13 : i32
    %c8_i32 = arith.constant 8 : i32
    %41 = arith.cmpi sle, %40, %c8_i32 : i32
    %42 = arith.extui %41 : i1 to i32
    %c0_i32_14 = arith.constant 0 : i32
    %43 = arith.cmpi ne, %42, %c0_i32_14 : i32
    scf.if %43 {
      %c0_18 = arith.constant 0 : index
      %c0_19 = arith.constant 0 : index
      %50 = vector.load %arg5[%c0_18, %c0_19] : memref<1x128xf32, #tpu.memory_space<vmem>>, vector<1x128xf32>
      %51 = arith.addf %50, %36 : vector<1x128xf32>
      %c0_20 = arith.constant 0 : index
      %c0_21 = arith.constant 0 : index
      %52 = vector.load %arg5[%c0_20, %c0_21] : memref<1x128xf32, #tpu.memory_space<vmem>>, vector<1x128xf32>
      tpu.vector_store %arg5[%c0_20, %c0_21], %51 {strides = array<i32>} : memref<1x128xf32, #tpu.memory_space<vmem>>, vector<1x128xf32>,
    } else {
    }
    %true = arith.constant true
    %44 = arith.xori %41, %true : i1
    %45 = arith.extui %44 : i1 to i32
    %c0_i32_15 = arith.constant 0 : i32
    %46 = arith.cmpi ne, %45, %c0_i32_15 : i32
    scf.if %46 {
      %50 = tpu.iota {dimensions = array<i32: 1>} : vector<1x128xi32>
      %51 = vector.broadcast %39 : i32 to vector<1x128xi32>
      %52 = arith.addi %51, %50 : vector<1x128xi32>
      %c8_i32_18 = arith.constant 8 : i32
      %53 = vector.broadcast %c8_i32_18 : i32 to vector<1x128xi32>
      %54 = arith.cmpi slt, %52, %53 : vector<1x128xi32>
      %c0_19 = arith.constant 0 : index
      %c0_20 = arith.constant 0 : index
      %55 = vector.load %arg5[%c0_19, %c0_20] : memref<1x128xf32, #tpu.memory_space<vmem>>, vector<1x128xf32>
      %cst_21 = arith.constant 0.000000e+00 : f32
      %56 = vector.broadcast %cst_21 : f32 to vector<1x128xf32>
      %57 = arith.select %54, %36, %56 : vector<1x128xi1>, vector<1x128xf32>
      %58 = arith.addf %55, %57 : vector<1x128xf32>
      %c0_22 = arith.constant 0 : index
      %c0_23 = arith.constant 0 : index
      %59 = vector.load %arg5[%c0_22, %c0_23] : memref<1x128xf32, #tpu.memory_space<vmem>>, vector<1x128xf32>
      tpu.vector_store %arg5[%c0_22, %c0_23], %58 {strides = array<i32>} : memref<1x128xf32, #tpu.memory_space<vmem>>, vector<1x128xf32>,
    } else {
    }
    %c0_i32_16 = arith.constant 0 : i32
    %47 = arith.cmpi eq, %arg1, %c0_i32_16 : i32
    %48 = arith.extui %47 : i1 to i32
    %c0_i32_17 = arith.constant 0 : i32
    %49 = arith.cmpi ne, %48, %c0_i32_17 : i32
    scf.if %49 {
      %c0_18 = arith.constant 0 : index
      %c0_19 = arith.constant 0 : index
      %50 = vector.load %arg5[%c0_18, %c0_19] : memref<1x128xf32, #tpu.memory_space<vmem>>, vector<1x128xf32>
      %51 = vector.shape_cast %50 : vector<1x128xf32> to vector<1x1x128xf32>
      %cst_20 = arith.constant dense<0.000000e+00> : vector<1xf32>
      %52 = vector.multi_reduction <add>, %51, %cst_20 [1, 2] : vector<1x1x128xf32> to vector<1xf32>
      %53 = vector.shape_cast %52 : vector<1xf32> to vector<1x1x1xf32>
      %54 = vector.extract %53[0, 0, 0] : f32 from vector<1x1x1xf32>
      %55 = vector.broadcast %54 : f32 to vector<8x128xf32>
      %c0_21 = arith.constant 0 : index
      %c0_22 = arith.constant 0 : index
      %56 = vector.load %arg4[%c0_21, %c0_22] : memref<8x128xf32, #tpu.memory_space<vmem>>, vector<8x128xf32>
      tpu.vector_store %arg4[%c0_21, %c0_22], %55 {strides = array<i32>} : memref<8x128xf32, #tpu.memory_space<vmem>>, vector<8x128xf32>,
    } else {
    }
    return
  }
  func.func @transform_0(%arg0: i32, %arg1: i32) -> (i32, i32) {
    %c1_i32 = arith.constant 1 : i32
    %0 = arith.muli %arg0, %c1_i32 : i32
    %1 = arith.addi %0, %arg1 : i32
    %c0_i32 = arith.constant 0 : i32
    %2 = arith.minsi %1, %c0_i32 : i32
    %c0_i32_0 = arith.constant 0 : i32
    %c0_i32_1 = arith.constant 0 : i32
    return %c0_i32_0, %2 : i32, i32
  }
  func.func @transform_1(%arg0: i32, %arg1: i32) -> (i32, i32) {
    %c1_i32 = arith.constant 1 : i32
    %0 = arith.muli %arg0, %c1_i32 : i32
    %1 = arith.addi %0, %arg1 : i32
    %c0_i32 = arith.constant 0 : i32
    %2 = arith.minsi %1, %c0_i32 : i32
    %c0_i32_0 = arith.constant 0 : i32
    %c0_i32_1 = arith.constant 0 : i32
    return %c0_i32_0, %2 : i32, i32
  }
  func.func @transform_2(%arg0: i32, %arg1: i32) -> (i32, i32) {
    %c0_i32 = arith.constant 0 : i32
    %c0_i32_0 = arith.constant 0 : i32
    return %arg0, %c0_i32 : i32, i32
  }
}

</mosaic_0001>

<llo_original>
// kernel: tpu_custom_call.1
$region0: #{tpu_custom_call.1}
  #allocation0 [shape = 'u32[]', space=smem, size = 0x4, offset = 0x4, fixed_abs, tag = 'smem constant byte address 0x4 - core index']
  #allocation1 [shape = 'u32[144,128]{1,0:T(1,128)}', space=vmem, size = 0x12000, scoped, tag = 'internal scratch']
  #allocation2 [shape = 'f32[1,128]{1,0:T(1,128)}', space=vmem, size = 0x200, scoped, tag = 'scratch operand']
  %s0 = inlined_call_operand.hbm [shape: f32[4,8], index: 0, kind: input, shape index: {}]
  %s1 = inlined_call_operand.vmem [shape: s32[1,8], index: 1, kind: input, shape index: {}]
  %s2 = inlined_call_operand.hbm [shape: f32[16,128], index: 2, kind: output, shape index: {}]
  %s3 = sld [smem:[#allocation0]]
  $region61: #{tpu_custom_call.1} parent=0
    _
  %s5 = ssub.s32 1, %s3
  %s6 = scalar_select 0, %s5, %s3
  $region1: #{tpu_custom_call.1} parent=0
    #allocation3 [shape = 'u8[4096]{0}', space=vmem, size = 0x1000, scoped, tag = 'input window, operand 0']
    #allocation4 [shape = 's32[2]{0}', space=sflag, size = 0x8, scoped, tag = 'scoped memory for tpu_custom_call.1']
    #allocation5 [shape = 's32[2]{0}', space=sflag, size = 0x8, scoped, tag = 'scoped memory for tpu_custom_call.1']
    #allocation6 [shape = 'u8[8192]{0}', space=vmem, size = 0x2000, scoped, tag = 'output window, operand 0']
    %7 = vsyncpa [#allocation4], 0
    %s8 = scalar_lea.sflag [#allocation4], 1
    %9 = vsyncpa %s8, 0
    %10 = vsyncpa [#allocation5], 0
    %s11 = scalar_lea.sflag [#allocation5], 1
    %12 = vsyncpa %s11, 0
    loop: start=0, step=1, limit=4
    $region2: #{tpu_custom_call.1} parent=1 // loop_pre_header
      _
    $region3: #{tpu_custom_call.1} parent=1 // loop_header
      %s14 = sphi 0, %s18
      %p15 = scmp.ge.s32.totalorder %s14, 4
      %s21 = sphi 0, %s33
      %s22 = sphi 0, %s29
      %s23 = sphi 0, %s21
      %s24 = sphi 0, %s22
      %s25 = sphi 0, %s23
      %s26 = sphi 0, %s24
      %s42 = sphi 0, %s44
      %s45 = sphi 0, %s42
      %s46 = sphi 0, %s45
      %s62 = sphi 0, %s46
      %s74 = sphi 0, %s76
      %s77 = sphi 0, %s74
      %s78 = sphi 0, %s77
      %s94 = sphi 0, %s78
      %s100 = sphi 0, %s102
      %s103 = sphi 0, %s100
      %s104 = sphi 0, %s103
      %s120 = sphi 0, %s104
    $region4: #{tpu_custom_call.1} parent=1 // loop_header_branch
      %17 = sbr.rel (%p15) target = $region8
    $region5: #{tpu_custom_call.1} parent=1 // loop_body
      %s19 = ssub.s32 %s14, 1
      %s20 = ssub.s32 %s14, 2
      %s27 = sadd.s32 1, %s22
      %p28 = scmp.ge.s32.totalorder %s27, 1
      %s29 = scalar_select %p28, 0, %s27
      %s30 = sadd.s32 1, %s21
      %s31 = scalar_select %p28, %s30, %s21
      %p32 = scmp.ge.s32.totalorder %s31, 2
      %s33 = scalar_select %p32, 0, %s31
      %s34 = sadd.s32 %s21, %s22
      %p35 = scmp.lt.s32.totalorder %s34, 0
      %s36 = scalar_select %p35, %s34, 0
      %s37 = sadd.s32 %s33, %s29
      %p38 = scmp.lt.s32.totalorder %s37, 0
      %s39 = scalar_select %p38, %s37, 0
      %s40 = ssub.s32 %s36, %s39
      %p41 = scmp.eq.s32.totalorder %s40, 0
      %s43 = sadd.s32 %s42, 1
      %s44 = scalar_select %p41, %s42, %s43
      %p47 = pneg %p41
      %p48 = scmp.eq.s32.totalorder %s14, 1
      %p49 = por %p47, %p48
      %p50 = scmp.ne.s32.totalorder %s42, %s45
      %p51 = scmp.eq.s32.totalorder %s14, 0
      %p52 = por %p50, %p51
      %p53 = scmp.ne.s32.totalorder %s42, %s45
      %p54 = scmp.eq.s32.totalorder %s19, 1
      %p55 = por %p53, %p54
      %p56 = scmp.ne.s32.totalorder %s45, %s46
      %p57 = scmp.eq.s32.totalorder %s19, 0
      %p58 = por %p56, %p57
      %p59 = scmp.ne.s32.totalorder %s45, %s46
      %p60 = scmp.eq.s32.totalorder %s20, 1
      %p61 = por %p59, %p60
      %p63 = scmp.ne.s32.totalorder %s46, %s62
      %p64 = scmp.eq.s32.totalorder %s20, 0
      %p65 = por %p63, %p64
      %s66 = sadd.s32 %s21, %s22
      %p67 = scmp.lt.s32.totalorder %s66, 0
      %s68 = scalar_select %p67, %s66, 0
      %s69 = sadd.s32 %s33, %s29
      %p70 = scmp.lt.s32.totalorder %s69, 0
      %s71 = scalar_select %p70, %s69, 0
      %s72 = ssub.s32 %s68, %s71
      %p73 = scmp.eq.s32.totalorder %s72, 0
      %s75 = sadd.s32 %s74, 1
      %s76 = scalar_select %p73, %s74, %s75
      %p79 = pneg %p73
      %p80 = scmp.eq.s32.totalorder %s14, 1
      %p81 = por %p79, %p80
      %p82 = scmp.ne.s32.totalorder %s74, %s77
      %p83 = scmp.eq.s32.totalorder %s14, 0
      %p84 = por %p82, %p83
      %p85 = scmp.ne.s32.totalorder %s74, %s77
      %p86 = scmp.eq.s32.totalorder %s19, 1
      %p87 = por %p85, %p86
      %p88 = scmp.ne.s32.totalorder %s77, %s78
      %p89 = scmp.eq.s32.totalorder %s19, 0
      %p90 = por %p88, %p89
      %p91 = scmp.ne.s32.totalorder %s77, %s78
      %p92 = scmp.eq.s32.totalorder %s20, 1
      %p93 = por %p91, %p92
      %p95 = scmp.ne.s32.totalorder %s78, %s94
      %p96 = scmp.eq.s32.totalorder %s20, 0
      %p97 = por %p95, %p96
      %s98 = ssub.s32 %s21, %s33
      %p99 = scmp.eq.s32.totalorder %s98, 0
      %s101 = sadd.s32 %s100, 1
      %s102 = scalar_select %p99, %s100, %s101
      %p105 = pneg %p99
      %p106 = scmp.eq.s32.totalorder %s14, 1
      %p107 = por %p105, %p106
      %p108 = scmp.ne.s32.totalorder %s100, %s103
      %p109 = scmp.eq.s32.totalorder %s14, 0
      %p110 = por %p108, %p109
      %p111 = scmp.ne.s32.totalorder %s100, %s103
      %p112 = scmp.eq.s32.totalorder %s19, 1
      %p113 = por %p111, %p112
      %p114 = scmp.ne.s32.totalorder %s103, %s104
      %p115 = scmp.eq.s32.totalorder %s19, 0
      %p116 = por %p114, %p115
      %p117 = scmp.ne.s32.totalorder %s103, %s104
      %p118 = scmp.eq.s32.totalorder %s20, 1
      %p119 = por %p117, %p118
      %p121 = scmp.ne.s32.totalorder %s104, %s120
      %p122 = scmp.eq.s32.totalorder %s20, 0
      %p123 = por %p121, %p122
      %p124 = scmp.le.s32.totalorder 1, %s14
      %p125 = scmp.lt.s32.totalorder %s14, 3
      %p126 = pnand %p124, %p125
      %p127 = pneg %p126
      // Predicated region
      $region9: #{tpu_custom_call.1} parent=5 // pred_check
        _
      $region10: #{tpu_custom_call.1} parent=5 // pred_check_branch
        %129 = sbr.rel (%p126) target = $region12
      $region11: #{tpu_custom_call.1} parent=5 // pred_region
        %s130 = ssub.s32 %s14, 1
      $region12: #{tpu_custom_call.1} parent=5 // pred_fallthru
        _
      %p131 = scmp.lt.s32.totalorder %s14, 2
      // Predicated region
      $region13: #{tpu_custom_call.1} parent=5 // pred_check
        %p132 = pneg %p131
      $region14: #{tpu_custom_call.1} parent=5 // pred_check_branch
        %134 = sbr.rel (%p132) target = $region16
      $region15: #{tpu_custom_call.1} parent=5 // pred_region
        // Predicated region
        $region17: #{tpu_custom_call.1} parent=15 // pred_check
          %p135 = pneg %p52
        $region18: #{tpu_custom_call.1} parent=15 // pred_check_branch
          %137 = sbr.rel (%p135) target = $region20
        $region19: #{tpu_custom_call.1} parent=15 // pred_region
          %s138 = sand.u32 %s42, 1
          %s139 = scalar_lea.sflag [#allocation4], %s138
          %s140 = sand.u32 %s42, 1
          %s141 = smul.addr %s140, 4
          %s142 = scalar_lea.vmem [#allocation3], %s141
          %s143 = sadd.s32 %s21, %s22
          %p144 = scmp.lt.s32.totalorder %s143, 0
          %s145 = scalar_select %p144, %s143, 0
          %s147 = ssub.s32 64, 64
          %148 = vsyncadd %s139, %s147
          %s149 = smul.addr %s145, 64
          %s150 = scalar_lea.hbm %s0, %s149
          %s152 = sshll.u32 %s142, 4
          %s153 = int_to_ptr.vmem [resolvable:$true] %s152
          %155 = dma.hbm_to_vmem [thread:$0]  %s150, 64, %s153, %s139
        $region20: #{tpu_custom_call.1} parent=15 // pred_fallthru
          _
        // Predicated region
        $region21: #{tpu_custom_call.1} parent=15 // pred_check
          %p156 = pneg %p84
        $region22: #{tpu_custom_call.1} parent=15 // pred_check_branch
          %158 = sbr.rel (%p156) target = $region24
        $region23: #{tpu_custom_call.1} parent=15 // pred_region
          %s159 = sadd.s32 %s21, %s22
          %p160 = scmp.lt.s32.totalorder %s159, 0
          %s161 = scalar_select %p160, %s159, 0
          %p162 = scmp.lt.s32.totalorder %s161, 0
          %s163 = scalar_select %p162, %s161, 0
          %s164 = scalar_lea.vmem %s1, %s163
          %s165 = sadd.s32 %s21, %s22
          %p166 = scmp.lt.s32.totalorder %s165, 0
          %s167 = scalar_select %p166, %s165, 0
        $region24: #{tpu_custom_call.1} parent=15 // pred_fallthru
          _
      $region16: #{tpu_custom_call.1} parent=5 // pred_fallthru
        _
      %p168 = scmp.le.s32.totalorder 1, %s14
      %p169 = scmp.lt.s32.totalorder %s14, 3
      %p170 = pnand %p168, %p169
      %p171 = pneg %p170
      // Predicated region
      $region25: #{tpu_custom_call.1} parent=5 // pred_check
        _
      $region26: #{tpu_custom_call.1} parent=5 // pred_check_branch
        %173 = sbr.rel (%p170) target = $region28
      $region27: #{tpu_custom_call.1} parent=5 // pred_region
        %s174 = ssub.s32 %s14, 1
        %s175 = sand.u32 %s45, 1
        %s176 = scalar_lea.sflag [#allocation4], %s175
        %s177 = sand.u32 %s45, 1
        %s178 = smul.addr %s177, 4
        %s179 = scalar_lea.vmem [#allocation3], %s178
        // Predicated region
        $region29: #{tpu_custom_call.1} parent=27 // pred_check
          %p180 = pneg %p58
        $region30: #{tpu_custom_call.1} parent=27 // pred_check_branch
          %182 = sbr.rel (%p180) target = $region32
        $region31: #{tpu_custom_call.1} parent=27 // pred_region
          %183 = dma.done %s176, 64
        $region32: #{tpu_custom_call.1} parent=27 // pred_fallthru
          _
        %s184 = sand.u32 %s45, 1
        %s185 = scalar_lea.sflag [#allocation4], %s184
        %s186 = sand.u32 %s45, 1
        %s187 = smul.addr %s186, 4
        %s188 = scalar_lea.vmem [#allocation3], %s187
        %p189 = pneg %p58
        %p190 = pneg %p55
        %s191 = sadd.s32 %s23, %s24
        %p192 = scmp.lt.s32.totalorder %s191, 0
        %s193 = scalar_select %p192, %s191, 0
        %p194 = scmp.lt.s32.totalorder %s193, 0
        %s195 = scalar_select %p194, %s193, 0
        %s196 = scalar_lea.vmem %s1, %s195
        %p197 = pneg %p90
        %p198 = pneg %p87
        %p199 = pneg %p116
        %p200 = pneg %p113
        %s201 = sand.u32 %s103, 1
        %s202 = scalar_lea.sflag [#allocation5], %s201
        %s203 = sand.u32 %s103, 1
        %s204 = smul.addr %s203, 8
        %s205 = scalar_lea.vmem [#allocation6], %s204
        %s206 = sadd.s32 %s23, %s24
        %p207 = scmp.lt.s32.totalorder %s206, 0
        %s208 = scalar_select %p207, %s206, 0
        %s209 = sadd.s32 %s23, %s24
        %p210 = scmp.lt.s32.totalorder %s209, 0
        %s211 = scalar_select %p210, %s209, 0
        %p212 = scmp.lt.s32.totalorder %s211, 0
        %s213 = scalar_select %p212, %s211, 0
        %s214 = scalar_lea.vmem %s1, %s213
        %s215 = sadd.s32 %s23, %s24
        %p216 = scmp.lt.s32.totalorder %s215, 0
        %s217 = scalar_select %p216, %s215, 0
        %p218 = scmp.eq.s32.totalorder %s24, 0
        // Predicated region
        $region33: #{tpu_custom_call.1} parent=27 // pred_check
          %p219 = pneg %p218
        $region34: #{tpu_custom_call.1} parent=27 // pred_check_branch
          %221 = sbr.rel (%p219) target = $region36
        $region35: #{tpu_custom_call.1} parent=27 // pred_region
          %222 = vst [vmem:[#allocation2] sm:$0x1] 0.0
        $region36: #{tpu_custom_call.1} parent=27 // pred_fallthru
          _
        %v223 = vld [vmem:[%s179] sm:$0xf]
        %v224 = vld [vmem:[%s214] sm:$0x1]
        %vm225 = vcmask 1043456
        %v226 = vsel %vm225, %v223, -inf
        %v227 = vrot.slane %v226, 4
        %v228 = vmax.f32 %v226, %v227
        %v229 = vrot.slane %v228, 2
        %v230 = vmax.f32 %v228, %v229
        %v231 = vrot.slane %v230, 1
        %v232 = vmax.f32 %v230, %v231
        %v233 = vsub.f32 %v223, %v232
        %v234 = vmul.f32 %v233, 1.442695
        %v235 = vpow.pop %v234
        %v236 = vsel %vm225, %v235, 0.0
        %v237 = vrot.slane %v236, 4
        %v238 = vadd.f32 %v236, %v237
        %v239 = vrot.slane %v238, 2
        %v240 = vadd.f32 %v238, %v239
        %v241 = vrot.slane %v240, 1
        %v242 = vadd.f32 %v240, %v241
        %v243 = vlaneseq
        %v244 = vshrl.u32 %v243, 7
        %v245 = vlaneseq
        %v246 = vshrl.u32 %v245, 7
        %v247 = vsub.s32 0, %v246
        %v248 = vrot.slane %v224, %v247
        %vm249 = vcmp.eq.s32.totalorder %v244, %v248
        %v250 = vsel %vm249, %v233, 0.0
        %v251 = vsel %vm225, %v250, 0.0
        %v252 = vrot.slane %v251, 4
        %v253 = vadd.f32 %v251, %v252
        %v254 = vrot.slane %v253, 2
        %v255 = vadd.f32 %v253, %v254
        %v256 = vrot.slane %v255, 1
        %v257 = vadd.f32 %v255, %v256
        %v258 = vsel %vm249, %v235, 0.0
        %v259 = vsel %vm225, %v258, 0.0
        %v260 = vrot.slane %v259, 4
        %v261 = vadd.f32 %v259, %v260
        %v262 = vrot.slane %v261, 2
        %v263 = vadd.f32 %v261, %v262
        %v264 = vrot.slane %v263, 1
        %v265 = vadd.f32 %v263, %v264
        %v266 = vlog2.pop %v242
        %v267 = vmul.f32 %v266, 0.6931472
        %v268 = vsub.f32 %v267, %v257
        %v269 = vmax.f32 %v268, 0.0
        %v270 = vrcp.pop %v242
        %v271 = vmul.f32 %v265, %v270
        %v272 = vsub.f32 1.0, %v271
        %v273 = vmax.f32 %v272, 0.0
        %v274 = vmul.f32 %v273, %v273
        %v275 = vmul.f32 %v274, 0.25
        %v276 = vmul.f32 %v275, %v269
        %s277 = sadd.s32 %s23, %s24
        %s278 = smul.u32 %s277, 128
        %s279 = sadd.s32 %s278, 128
        %p280 = scmp.le.s32.totalorder %s279, 8
        // Predicated region
        $region37: #{tpu_custom_call.1} parent=27 // pred_check
          %p281 = pneg %p280
        $region38: #{tpu_custom_call.1} parent=27 // pred_check_branch
          %283 = sbr.rel (%p281) target = $region40
        $region39: #{tpu_custom_call.1} parent=27 // pred_region
          %v284 = vld [vmem:[#allocation2] sm:$0x1]
          %v285 = vadd.f32 %v284, %v276
          %286 = vst [vmem:[#allocation2] sm:$0x1] %v285
        $region40: #{tpu_custom_call.1} parent=27 // pred_fallthru
          _
        %p287 = scmp.gt.s32.totalorder %s279, 8
        // Predicated region
        $region41: #{tpu_custom_call.1} parent=27 // pred_check
          %p288 = pneg %p287
        $region42: #{tpu_custom_call.1} parent=27 // pred_check_branch
          %290 = sbr.rel (%p288) target = $region44
        $region43: #{tpu_custom_call.1} parent=27 // pred_region
          %v291 = vlaneseq
          %v292 = vand.u32 %v291, 127
          %v293 = vstv %s278
          %v294 = vadd.s32 %v293, %v292
          %vm295 = vcmp.lt.s32.totalorder %v294, 8
          %v296 = vld [vmem:[#allocation2] sm:$0x1]
          %v297 = vsel %vm295, %v276, 0.0
          %v298 = vadd.f32 %v296, %v297
          %299 = vst [vmem:[#allocation2] sm:$0x1] %v298
        $region44: #{tpu_custom_call.1} parent=27 // pred_fallthru
          _
        // Predicated region
        $region45: #{tpu_custom_call.1} parent=27 // pred_check
          %p300 = pneg %p218
        $region46: #{tpu_custom_call.1} parent=27 // pred_check_branch
          %302 = sbr.rel (%p300) target = $region48
        $region47: #{tpu_custom_call.1} parent=27 // pred_region
          %v303 = vld [vmem:[#allocation2] sm:$0x1]
          %vm304 = vcmask 1040384
          %v305 = vsel %vm304, %v303, 0.0
          %306 = vadd.xlane.f32.xlu0 %v305
          %v307 = vpop.xlane.xlu0 %306
          %v308 = vrot.slane %v307, 4
          %v309 = vadd.f32 %v307, %v308
          %v310 = vrot.slane %v309, 2
          %v311 = vadd.f32 %v309, %v310
          %v312 = vrot.slane %v311, 1
          %v313 = vadd.f32 %v311, %v312
          %s314 = vtos %v313
          %v315 = vstv %s314
          %316 = vst [vmem:[%s205] sm:$0xff] %v315
        $region48: #{tpu_custom_call.1} parent=27 // pred_fallthru
          _
        %s317 = sand.u32 %s103, 1
        %s318 = scalar_lea.sflag [#allocation5], %s317
        %s319 = sand.u32 %s103, 1
        %s320 = smul.addr %s319, 8
        %s321 = scalar_lea.vmem [#allocation6], %s320
        // Predicated region
        $region49: #{tpu_custom_call.1} parent=27 // pred_check
          %p322 = pneg %p113
        $region50: #{tpu_custom_call.1} parent=27 // pred_check_branch
          %324 = sbr.rel (%p322) target = $region52
        $region51: #{tpu_custom_call.1} parent=27 // pred_region
          %s326 = ssub.s32 128, 128
          %327 = vsyncadd %s318, %s326
          %s328 = smul.addr %s23, 128
          %s329 = scalar_lea.hbm %s2, %s328
          %s331 = sshll.u32 %s321, 4
          %s332 = int_to_ptr.vmem [resolvable:$true] %s331
          %334 = dma.vmem_to_hbm [thread:$0]  %s332, 128, %s329, %s318
        $region52: #{tpu_custom_call.1} parent=27 // pred_fallthru
          _
      $region28: #{tpu_custom_call.1} parent=5 // pred_fallthru
        _
      %p335 = scmp.le.s32.totalorder 2, %s14
      // Predicated region
      $region53: #{tpu_custom_call.1} parent=5 // pred_check
        %p336 = pneg %p335
      $region54: #{tpu_custom_call.1} parent=5 // pred_check_branch
        %338 = sbr.rel (%p336) target = $region56
      $region55: #{tpu_custom_call.1} parent=5 // pred_region
        %s339 = ssub.s32 %s14, 2
        // Predicated region
        $region57: #{tpu_custom_call.1} parent=55 // pred_check
          %p340 = pneg %p119
        $region58: #{tpu_custom_call.1} parent=55 // pred_check_branch
          %342 = sbr.rel (%p340) target = $region60
        $region59: #{tpu_custom_call.1} parent=55 // pred_region
          %s343 = sand.u32 %s104, 1
          %s344 = scalar_lea.sflag [#allocation5], %s343
          %s345 = sand.u32 %s104, 1
          %s346 = smul.addr %s345, 8
          %s347 = scalar_lea.vmem [#allocation6], %s346
          %348 = dma.done %s344, 128
        $region60: #{tpu_custom_call.1} parent=55 // pred_fallthru
          _
      $region56: #{tpu_custom_call.1} parent=5 // pred_fallthru
        _
    $region6: #{tpu_custom_call.1} parent=1 // loop_footer
      %s18 = sadd.s32 1, %s14
    $region7: #{tpu_custom_call.1} parent=1 // loop_footer_branch
      %13 = sbr.rel target = $region3
    $region8: #{tpu_custom_call.1} parent=1 // loop_exit
      _
    %349 = vsyncpa [#allocation4], 1
    %s350 = scalar_lea.sflag [#allocation4], 1
    %351 = vsyncpa %s350, 1
    %352 = vsyncpa [#allocation5], 1
    %s353 = scalar_lea.sflag [#allocation5], 1
    %354 = vsyncpa %s353, 1

</llo_original>
